<compile_context>
chip_gen: v7x
topology: tpu7x:2x2x1
jax: 0.10.0
libtpu: 0.0.40
codegen_flags: <defaults>
</compile_context>

<pallas_src>
import functools

import jax
import jax.numpy as jnp
from jax.experimental import pallas as pl
from jax.experimental.pallas import tpu as pltpu

CLIP_MAX = 3.0
LN_EPS = 1e-5
HIDDEN = 256
SP_ROWS = 16        # packed small-param rows (13 used, padded to 16 sublanes)
OUT_LANES = 128     # lane-dense output slab width


def _round_up(v, m):
    return ((v + m - 1) // m) * m


def _ln(h, gamma, beta):
    """LayerNorm, single-pass variance, gamma folded into the rsqrt scale."""
    mu = jnp.mean(h, axis=-1, keepdims=True)
    var = jnp.mean(h * h, axis=-1, keepdims=True) - mu * mu
    return (h - mu) * (jax.lax.rsqrt(var + LN_EPS) * gamma) + beta


def critic_kernel(inv_ref, x_ref, a_ref, w1x_ref, w1a_ref, w2_ref, w3_ref,
                  sp_ref, o_ref):
    xd = x_ref.shape[1]           # obs + 2*goal
    ad = a_ref.shape[1]           # action dim
    inv = inv_ref[0, 0]           # 1 / max_action (SMEM scalar)

    xs = x_ref[...]               # (TB, xd) f32
    ac = a_ref[...] * inv         # (TB, ad) f32  (actions / max_action)

    # --- LayerNorm over the virtual concat [xs | ac] (width xd+ad), then clip ---
    inv_d = 1.0 / float(xd + ad)
    mu = (jnp.sum(xs, axis=-1, keepdims=True)
          + jnp.sum(ac, axis=-1, keepdims=True)) * inv_d
    ms = (jnp.sum(xs * xs, axis=-1, keepdims=True)
          + jnp.sum(ac * ac, axis=-1, keepdims=True)) * inv_d
    r = jax.lax.rsqrt(ms - mu * mu + LN_EPS)                 # (TB, 1)

    g1x = sp_ref[0:1, 0:xd]
    g1a = sp_ref[1:2, 0:ad]
    be1x = sp_ref[2:3, 0:xd]
    be1a = sp_ref[3:4, 0:ad]
    xn = jnp.clip((xs - mu) * r * g1x + be1x, -CLIP_MAX, CLIP_MAX)
    an = jnp.clip((ac - mu) * r * g1a + be1a, -CLIP_MAX, CLIP_MAX)

    # --- fc1 (split over the concat axis) -> relu -> LayerNorm ---
    b1 = sp_ref[4:5, :]
    h = (jnp.dot(xn, w1x_ref[...], preferred_element_type=jnp.float32)
         + jnp.dot(an, w1a_ref[...], preferred_element_type=jnp.float32) + b1)
    h = jnp.maximum(h, 0.0)
    h = _ln(h, sp_ref[5:6, :], sp_ref[6:7, :])

    # --- fc2 (bf16 weights, f32 accumulate) -> relu -> LayerNorm ---
    h = jnp.dot(h.astype(jnp.bfloat16), w2_ref[...],
                preferred_element_type=jnp.float32) + sp_ref[7:8, :]
    h = jnp.maximum(h, 0.0)
    h = _ln(h, sp_ref[8:9, :], sp_ref[9:10, :])

    # --- fc3 (bf16 weights) -> relu ---
    h = jnp.dot(h.astype(jnp.bfloat16), w3_ref[...],
                preferred_element_type=jnp.float32) + sp_ref[10:11, :]
    h = jnp.maximum(h, 0.0)

    # --- q_out as VPU multiply + XLU lane reduce (avoids an N=1 MXU matmul) ---
    wq_t = sp_ref[11:12, :]                                   # (1, 256)
    bq = sp_ref[12:13, 0:1]                                   # (1, 1)
    q = jnp.sum(h * wq_t, axis=-1, keepdims=True) + bq        # (TB, 1)

    # Lane-dense store: broadcast across 128 lanes; wrapper slices column 0.
    o_ref[...] = jnp.broadcast_to(q, o_ref.shape)


def make_critic_params(key, in_dim):
    """PyTorch-default-style init. Linear: U(-1/sqrt(fan_in), 1/sqrt(fan_in));
    LayerNorm: gamma=1, beta=0. Weights stored as [in_features, out_features]."""
    ks = jax.random.split(key, 8)

    def linear(kw, kb, fan_in, fan_out):
        bound = 1.0 / jnp.sqrt(float(fan_in))
        w = jax.random.uniform(kw, (fan_in, fan_out), jnp.float32, -bound, bound)
        b = jax.random.uniform(kb, (1, fan_out), jnp.float32, -bound, bound)
        return w, b

    w1, b1 = linear(ks[0], ks[1], in_dim, HIDDEN)
    w2, b2 = linear(ks[2], ks[3], HIDDEN, HIDDEN)
    w3, b3 = linear(ks[4], ks[5], HIDDEN, HIDDEN)
    wq, bq = linear(ks[6], ks[7], HIDDEN, 1)

    return dict(
        g1=jnp.ones((1, in_dim), jnp.float32), be1=jnp.zeros((1, in_dim), jnp.float32),
        w1=w1, b1=b1,
        g2=jnp.ones((1, HIDDEN), jnp.float32), be2=jnp.zeros((1, HIDDEN), jnp.float32),
        w2=w2, b2=b2,
        g3=jnp.ones((1, HIDDEN), jnp.float32), be3=jnp.zeros((1, HIDDEN), jnp.float32),
        w3=w3, b3=b3,
        wq=wq, bq=bq,
    )


def pack_critic_params(params, xd, ad):
    """One-time prep: split w1 at the concat boundary, cast big weights to bf16,
    and pack all small 1-D params into a single (SP_ROWS, 256) f32 array."""
    g1 = params["g1"].reshape(-1).astype(jnp.float32)
    be1 = params["be1"].reshape(-1).astype(jnp.float32)

    sp = jnp.zeros((SP_ROWS, HIDDEN), jnp.float32)
    sp = sp.at[0, :xd].set(g1[:xd])
    sp = sp.at[1, :ad].set(g1[xd:xd + ad])
    sp = sp.at[2, :xd].set(be1[:xd])
    sp = sp.at[3, :ad].set(be1[xd:xd + ad])
    sp = sp.at[4, :].set(params["b1"].reshape(-1))
    sp = sp.at[5, :].set(params["g2"].reshape(-1))
    sp = sp.at[6, :].set(params["be2"].reshape(-1))
    sp = sp.at[7, :].set(params["b2"].reshape(-1))
    sp = sp.at[8, :].set(params["g3"].reshape(-1))
    sp = sp.at[9, :].set(params["be3"].reshape(-1))
    sp = sp.at[10, :].set(params["b3"].reshape(-1))
    sp = sp.at[11, :].set(params["wq"].reshape(-1))           # wq transposed -> row
    sp = sp.at[12, 0].set(params["bq"].reshape(-1)[0])

    w1 = params["w1"].astype(jnp.float32)
    return dict(
        w1x=w1[:xd, :],                       # (xd, 256) f32 (tiny; keep full precision)
        w1a=w1[xd:xd + ad, :],                # (ad, 256) f32
        w2=params["w2"].astype(jnp.bfloat16),  # dominant HBM bytes -> bf16
        w3=params["w3"].astype(jnp.bfloat16),
        small=sp,
    )


@jax.jit
def critic_forward(x, actions, kparams, max_action):
    x = x.astype(jnp.float32)
    actions = actions.astype(jnp.float32)
    B, xd = x.shape
    ad = actions.shape[1]

    # Batch tiling: weights stay VMEM-resident across grid steps (constant index maps).
    TB = min(128, _round_up(B, 8))
    Bp = _round_up(B, TB)
    xp = jnp.pad(x, ((0, Bp - B), (0, 0)))
    ap = jnp.pad(actions, ((0, Bp - B), (0, 0)))

    inv = jnp.reshape(1.0 / jnp.asarray(max_action, jnp.float32), (1, 1))

    out = pl.pallas_call(
        critic_kernel,
        grid=(Bp // TB,),
        in_specs=[
            pl.BlockSpec(memory_space=pltpu.MemorySpace.SMEM),        # 1/max_action
            pl.BlockSpec((TB, xd), lambda i: (i, 0)),                 # x tile
            pl.BlockSpec((TB, ad), lambda i: (i, 0)),                 # actions tile
            pl.BlockSpec((xd, HIDDEN), lambda i: (0, 0)),             # w1x (resident)
            pl.BlockSpec((ad, HIDDEN), lambda i: (0, 0)),             # w1a (resident)
            pl.BlockSpec((HIDDEN, HIDDEN), lambda i: (0, 0)),         # w2  (resident)
            pl.BlockSpec((HIDDEN, HIDDEN), lambda i: (0, 0)),         # w3  (resident)
            pl.BlockSpec((SP_ROWS, HIDDEN), lambda i: (0, 0)),        # packed small params
        ],
        out_specs=pl.BlockSpec((TB, OUT_LANES), lambda i: (i, 0)),
        out_shape=jax.ShapeDtypeStruct((Bp, OUT_LANES), jnp.float32),
        compiler_params=pltpu.CompilerParams(dimension_semantics=("parallel",)),
    )(inv, xp, ap, kparams["w1x"], kparams["w1a"], kparams["w2"], kparams["w3"],
      kparams["small"])

    return out[:B, :1]


def critic_reference(x, actions, params, max_action):
    """Pure-JAX reference (w2/w3 rounded through bf16 to match kernel weights)."""
    def ln(h, g, b):
        mu = jnp.mean(h, -1, keepdims=True)
        var = jnp.mean((h - mu) ** 2, -1, keepdims=True)
        return (h - mu) * jax.lax.rsqrt(var + LN_EPS) * g + b

    w2 = params["w2"].astype(jnp.bfloat16).astype(jnp.float32)
    w3 = params["w3"].astype(jnp.bfloat16).astype(jnp.float32)

    h = jnp.concatenate([x, actions / max_action], axis=1).astype(jnp.float32)
    h = jnp.clip(ln(h, params["g1"], params["be1"]), -CLIP_MAX, CLIP_MAX)
    h = jnp.maximum(h @ params["w1"] + params["b1"], 0.0)
    h = ln(h, params["g2"], params["be2"])
    h = jnp.maximum(h @ w2 + params["b2"], 0.0)
    h = ln(h, params["g3"], params["be3"])
    h = jnp.maximum(h @ w3 + params["b3"], 0.0)
    return h @ params["wq"] + params["bq"]


if __name__ == "__main__":
    # Small env consistent with the module: obs=10, goal=3, action=4 -> D = 20
    env_params = {"obs": 10, "goal": 3, "action": 4, "action_max": 1.0}
    batch = 8
    xd = env_params["obs"] + 2 * env_params["goal"]   # 16
    ad = env_params["action"]                          # 4
    in_dim = xd + ad                                   # 20

    key = jax.random.PRNGKey(0)
    k_x, k_a, k_p = jax.random.split(key, 3)
    x = jax.random.normal(k_x, (batch, xd), jnp.float32)
    actions = jax.random.uniform(k_a, (batch, ad), jnp.float32,
                                 -env_params["action_max"], env_params["action_max"])

    params = make_critic_params(k_p, in_dim)
    kparams = pack_critic_params(params, xd, ad)

    q = critic_forward(x, actions, kparams, env_params["action_max"])
    q = jax.block_until_ready(q)

    q_ref = critic_reference(x, actions, params, env_params["action_max"])
    assert q.shape == (batch, 1)
    # bf16 weights + bf16 activation casts for fc2/fc3 (f32 accumulate): loosened tol.
    assert jnp.allclose(q, q_ref, atol=2e-2, rtol=2e-2), (q, q_ref)

    print("KERNEL_OK")
</pallas_src>

<mosaic_0001>
module attributes {stable_mosaic.version = 11 : i64} {
  func.func @critic_kernel(%arg0: i32, %arg1: memref<1x1xf32, #tpu.memory_space<smem>>, %arg2: memref<8x16xf32, #tpu.memory_space<vmem>>, %arg3: memref<8x4xf32, #tpu.memory_space<vmem>>, %arg4: memref<16x256xf32, #tpu.memory_space<vmem>>, %arg5: memref<4x256xf32, #tpu.memory_space<vmem>>, %arg6: memref<256x256xbf16, #tpu.memory_space<vmem>>, %arg7: memref<256x256xbf16, #tpu.memory_space<vmem>>, %arg8: memref<16x256xf32, #tpu.memory_space<vmem>>, %arg9: memref<8x128xf32, #tpu.memory_space<vmem>>) attributes {dimension_semantics = [#tpu.dimension_semantics<parallel>], iteration_bounds = array<i64: 1>, scalar_prefetch = 0 : i64, scratch_operands = 0 : i64, tpu.core_type = #tpu.core_type<tc>, window_params = [{transform_indices = @transform_0, window_bounds = array<i64: 1, 1>}, {transform_indices = @transform_1, window_bounds = array<i64: 8, 16>}, {transform_indices = @transform_2, window_bounds = array<i64: 8, 4>}, {pipeline_mode = #tpu.pipeline_mode<synchronous>, transform_indices = @transform_3, window_bounds = array<i64: 16, 256>}, {pipeline_mode = #tpu.pipeline_mode<synchronous>, transform_indices = @transform_4, window_bounds = array<i64: 4, 256>}, {pipeline_mode = #tpu.pipeline_mode<synchronous>, transform_indices = @transform_5, window_bounds = array<i64: 256, 256>}, {pipeline_mode = #tpu.pipeline_mode<synchronous>, transform_indices = @transform_6, window_bounds = array<i64: 256, 256>}, {pipeline_mode = #tpu.pipeline_mode<synchronous>, transform_indices = @transform_7, window_bounds = array<i64: 16, 256>}, {transform_indices = @transform_8, window_bounds = array<i64: 8, 128>}]} {
    %c0 = arith.constant 0 : index
    %c0_0 = arith.constant 0 : index
    %0 = memref.load %arg1[%c0, %c0_0] : memref<1x1xf32, #tpu.memory_space<smem>>
    %c0_1 = arith.constant 0 : index
    %c0_2 = arith.constant 0 : index
    %1 = vector.load %arg2[%c0_1, %c0_2] : memref<8x16xf32, #tpu.memory_space<vmem>>, vector<8x16xf32>
    %c0_3 = arith.constant 0 : index
    %c0_4 = arith.constant 0 : index
    %2 = vector.load %arg3[%c0_3, %c0_4] : memref<8x4xf32, #tpu.memory_space<vmem>>, vector<8x4xf32>
    %3 = vector.broadcast %0 : f32 to vector<8x4xf32>
    %4 = arith.mulf %2, %3 : vector<8x4xf32>
    %cst = arith.constant dense<0.000000e+00> : vector<8xf32>
    %5 = vector.multi_reduction <add>, %1, %cst [1] : vector<8x16xf32> to vector<8xf32>
    %6 = vector.shape_cast %5 : vector<8xf32> to vector<8x1xf32>
    %cst_5 = arith.constant dense<0.000000e+00> : vector<8xf32>
    %7 = vector.multi_reduction <add>, %4, %cst_5 [1] : vector<8x4xf32> to vector<8xf32>
    %8 = vector.shape_cast %7 : vector<8xf32> to vector<8x1xf32>
    %9 = arith.addf %6, %8 : vector<8x1xf32>
    %cst_6 = arith.constant 5.000000e-02 : f32
    %10 = vector.broadcast %cst_6 : f32 to vector<8x1xf32>
    %11 = arith.mulf %9, %10 : vector<8x1xf32>
    %12 = arith.mulf %1, %1 : vector<8x16xf32>
    %cst_7 = arith.constant dense<0.000000e+00> : vector<8xf32>
    %13 = vector.multi_reduction <add>, %12, %cst_7 [1] : vector<8x16xf32> to vector<8xf32>
    %14 = vector.shape_cast %13 : vector<8xf32> to vector<8x1xf32>
    %15 = arith.mulf %4, %4 : vector<8x4xf32>
    %cst_8 = arith.constant dense<0.000000e+00> : vector<8xf32>
    %16 = vector.multi_reduction <add>, %15, %cst_8 [1] : vector<8x4xf32> to vector<8xf32>
    %17 = vector.shape_cast %16 : vector<8xf32> to vector<8x1xf32>
    %18 = arith.addf %14, %17 : vector<8x1xf32>
    %cst_9 = arith.constant 5.000000e-02 : f32
    %19 = vector.broadcast %cst_9 : f32 to vector<8x1xf32>
    %20 = arith.mulf %18, %19 : vector<8x1xf32>
    %21 = arith.mulf %11, %11 : vector<8x1xf32>
    %22 = arith.subf %20, %21 : vector<8x1xf32>
    %cst_10 = arith.constant 9.99999974E-6 : f32
    %23 = vector.broadcast %cst_10 : f32 to vector<8x1xf32>
    %24 = arith.addf %22, %23 : vector<8x1xf32>
    %25 = math.rsqrt %24 : vector<8x1xf32>
    %c0_11 = arith.constant 0 : index
    %c0_12 = arith.constant 0 : index
    %26 = vector.load %arg8[%c0_11, %c0_12] : memref<16x256xf32, #tpu.memory_space<vmem>>, vector<1x16xf32>
    %c1 = arith.constant 1 : index
    %c0_13 = arith.constant 0 : index
    %27 = vector.load %arg8[%c1, %c0_13] : memref<16x256xf32, #tpu.memory_space<vmem>>, vector<1x4xf32>
    %c2 = arith.constant 2 : index
    %c0_14 = arith.constant 0 : index
    %28 = vector.load %arg8[%c2, %c0_14] : memref<16x256xf32, #tpu.memory_space<vmem>>, vector<1x16xf32>
    %c3 = arith.constant 3 : index
    %c0_15 = arith.constant 0 : index
    %29 = vector.load %arg8[%c3, %c0_15] : memref<16x256xf32, #tpu.memory_space<vmem>>, vector<1x4xf32>
    %30 = vector.broadcast %11 : vector<8x1xf32> to vector<8x16xf32>
    %31 = arith.subf %1, %30 : vector<8x16xf32>
    %32 = vector.broadcast %25 : vector<8x1xf32> to vector<8x16xf32>
    %33 = arith.mulf %31, %32 : vector<8x16xf32>
    %34 = vector.broadcast %26 : vector<1x16xf32> to vector<8x16xf32>
    %35 = arith.mulf %33, %34 : vector<8x16xf32>
    %36 = vector.broadcast %28 : vector<1x16xf32> to vector<8x16xf32>
    %37 = arith.addf %35, %36 : vector<8x16xf32>
    %cst_16 = arith.constant -3.000000e+00 : f32
    %cst_17 = arith.constant 3.000000e+00 : f32
    %38 = vector.broadcast %cst_16 : f32 to vector<8x16xf32>
    %39 = arith.maximumf %38, %37 : vector<8x16xf32>
    %40 = vector.broadcast %cst_17 : f32 to vector<8x16xf32>
    %41 = arith.minimumf %40, %39 : vector<8x16xf32>
    %42 = vector.broadcast %11 : vector<8x1xf32> to vector<8x4xf32>
    %43 = arith.subf %4, %42 : vector<8x4xf32>
    %44 = vector.broadcast %25 : vector<8x1xf32> to vector<8x4xf32>
    %45 = arith.mulf %43, %44 : vector<8x4xf32>
    %46 = vector.broadcast %27 : vector<1x4xf32> to vector<8x4xf32>
    %47 = arith.mulf %45, %46 : vector<8x4xf32>
    %48 = vector.broadcast %29 : vector<1x4xf32> to vector<8x4xf32>
    %49 = arith.addf %47, %48 : vector<8x4xf32>
    %cst_18 = arith.constant -3.000000e+00 : f32
    %cst_19 = arith.constant 3.000000e+00 : f32
    %50 = vector.broadcast %cst_18 : f32 to vector<8x4xf32>
    %51 = arith.maximumf %50, %49 : vector<8x4xf32>
    %52 = vector.broadcast %cst_19 : f32 to vector<8x4xf32>
    %53 = arith.minimumf %52, %51 : vector<8x4xf32>
    %c4 = arith.constant 4 : index
    %c0_20 = arith.constant 0 : index
    %54 = vector.load %arg8[%c4, %c0_20] : memref<16x256xf32, #tpu.memory_space<vmem>>, vector<1x256xf32>
    %c0_21 = arith.constant 0 : index
    %c0_22 = arith.constant 0 : index
    %55 = vector.load %arg4[%c0_21, %c0_22] : memref<16x256xf32, #tpu.memory_space<vmem>>, vector<16x256xf32>
    %cst_23 = arith.constant dense<0.000000e+00> : vector<8x256xf32>
    %56 = tpu.matmul %41, %55, %cst_23 {dimension_numbers = #tpu.dot_dimension_numbers<[1], [0], [0], [1], [0, 0, 1, 1], [], []>} : vector<8x16xf32>, vector<16x256xf32>, vector<8x256xf32> -> vector<8x256xf32>
    %c0_24 = arith.constant 0 : index
    %c0_25 = arith.constant 0 : index
    %57 = vector.load %arg5[%c0_24, %c0_25] : memref<4x256xf32, #tpu.memory_space<vmem>>, vector<4x256xf32>
    %cst_26 = arith.constant dense<0.000000e+00> : vector<8x256xf32>
    %58 = tpu.matmul %53, %57, %cst_26 {dimension_numbers = #tpu.dot_dimension_numbers<[1], [0], [0], [1], [0, 0, 1, 1], [], []>} : vector<8x4xf32>, vector<4x256xf32>, vector<8x256xf32> -> vector<8x256xf32>
    %59 = arith.addf %56, %58 : vector<8x256xf32>
    %60 = vector.broadcast %54 : vector<1x256xf32> to vector<8x256xf32>
    %61 = arith.addf %59, %60 : vector<8x256xf32>
    %cst_27 = arith.constant 0.000000e+00 : f32
    %62 = vector.broadcast %cst_27 : f32 to vector<8x256xf32>
    %63 = arith.maximumf %61, %62 : vector<8x256xf32>
    %c5 = arith.constant 5 : index
    %c0_28 = arith.constant 0 : index
    %64 = vector.load %arg8[%c5, %c0_28] : memref<16x256xf32, #tpu.memory_space<vmem>>, vector<1x256xf32>
    %c6 = arith.constant 6 : index
    %c0_29 = arith.constant 0 : index
    %65 = vector.load %arg8[%c6, %c0_29] : memref<16x256xf32, #tpu.memory_space<vmem>>, vector<1x256xf32>
    %cst_30 = arith.constant dense<0.000000e+00> : vector<8xf32>
    %66 = vector.multi_reduction <add>, %63, %cst_30 [1] : vector<8x256xf32> to vector<8xf32>
    %67 = vector.shape_cast %66 : vector<8xf32> to vector<8x1xf32>
    %cst_31 = arith.constant 2.560000e+02 : f32
    %68 = vector.broadcast %cst_31 : f32 to vector<8x1xf32>
    %69 = arith.divf %67, %68 : vector<8x1xf32>
    %70 = arith.mulf %63, %63 : vector<8x256xf32>
    %cst_32 = arith.constant dense<0.000000e+00> : vector<8xf32>
    %71 = vector.multi_reduction <add>, %70, %cst_32 [1] : vector<8x256xf32> to vector<8xf32>
    %72 = vector.shape_cast %71 : vector<8xf32> to vector<8x1xf32>
    %cst_33 = arith.constant 2.560000e+02 : f32
    %73 = vector.broadcast %cst_33 : f32 to vector<8x1xf32>
    %74 = arith.divf %72, %73 : vector<8x1xf32>
    %75 = arith.mulf %69, %69 : vector<8x1xf32>
    %76 = arith.subf %74, %75 : vector<8x1xf32>
    %77 = vector.broadcast %69 : vector<8x1xf32> to vector<8x256xf32>
    %78 = arith.subf %63, %77 : vector<8x256xf32>
    %cst_34 = arith.constant 9.99999974E-6 : f32
    %79 = vector.broadcast %cst_34 : f32 to vector<8x1xf32>
    %80 = arith.addf %76, %79 : vector<8x1xf32>
    %81 = math.rsqrt %80 : vector<8x1xf32>
    %82 = vector.broadcast %81 : vector<8x1xf32> to vector<8x256xf32>
    %83 = vector.broadcast %64 : vector<1x256xf32> to vector<8x256xf32>
    %84 = arith.mulf %82, %83 : vector<8x256xf32>
    %85 = arith.mulf %78, %84 : vector<8x256xf32>
    %86 = vector.broadcast %65 : vector<1x256xf32> to vector<8x256xf32>
    %87 = arith.addf %85, %86 : vector<8x256xf32>
    %88 = arith.truncf %87 : vector<8x256xf32> to vector<8x256xbf16>
    %c0_35 = arith.constant 0 : index
    %c0_36 = arith.constant 0 : index
    %89 = vector.load %arg6[%c0_35, %c0_36] : memref<256x256xbf16, #tpu.memory_space<vmem>>, vector<256x256xbf16>
    %cst_37 = arith.constant dense<0.000000e+00> : vector<8x256xf32>
    %90 = tpu.matmul %88, %89, %cst_37 {dimension_numbers = #tpu.dot_dimension_numbers<[1], [0], [0], [1], [0, 0, 1, 1], [], []>} : vector<8x256xbf16>, vector<256x256xbf16>, vector<8x256xf32> -> vector<8x256xf32>
    %c7 = arith.constant 7 : index
    %c0_38 = arith.constant 0 : index
    %91 = vector.load %arg8[%c7, %c0_38] : memref<16x256xf32, #tpu.memory_space<vmem>>, vector<1x256xf32>
    %92 = vector.broadcast %91 : vector<1x256xf32> to vector<8x256xf32>
    %93 = arith.addf %90, %92 : vector<8x256xf32>
    %cst_39 = arith.constant 0.000000e+00 : f32
    %94 = vector.broadcast %cst_39 : f32 to vector<8x256xf32>
    %95 = arith.maximumf %93, %94 : vector<8x256xf32>
    %c8 = arith.constant 8 : index
    %c0_40 = arith.constant 0 : index
    %96 = vector.load %arg8[%c8, %c0_40] : memref<16x256xf32, #tpu.memory_space<vmem>>, vector<1x256xf32>
    %c9 = arith.constant 9 : index
    %c0_41 = arith.constant 0 : index
    %97 = vector.load %arg8[%c9, %c0_41] : memref<16x256xf32, #tpu.memory_space<vmem>>, vector<1x256xf32>
    %cst_42 = arith.constant dense<0.000000e+00> : vector<8xf32>
    %98 = vector.multi_reduction <add>, %95, %cst_42 [1] : vector<8x256xf32> to vector<8xf32>
    %99 = vector.shape_cast %98 : vector<8xf32> to vector<8x1xf32>
    %cst_43 = arith.constant 2.560000e+02 : f32
    %100 = vector.broadcast %cst_43 : f32 to vector<8x1xf32>
    %101 = arith.divf %99, %100 : vector<8x1xf32>
    %102 = arith.mulf %95, %95 : vector<8x256xf32>
    %cst_44 = arith.constant dense<0.000000e+00> : vector<8xf32>
    %103 = vector.multi_reduction <add>, %102, %cst_44 [1] : vector<8x256xf32> to vector<8xf32>
    %104 = vector.shape_cast %103 : vector<8xf32> to vector<8x1xf32>
    %cst_45 = arith.constant 2.560000e+02 : f32
    %105 = vector.broadcast %cst_45 : f32 to vector<8x1xf32>
    %106 = arith.divf %104, %105 : vector<8x1xf32>
    %107 = arith.mulf %101, %101 : vector<8x1xf32>
    %108 = arith.subf %106, %107 : vector<8x1xf32>
    %109 = vector.broadcast %101 : vector<8x1xf32> to vector<8x256xf32>
    %110 = arith.subf %95, %109 : vector<8x256xf32>
    %cst_46 = arith.constant 9.99999974E-6 : f32
    %111 = vector.broadcast %cst_46 : f32 to vector<8x1xf32>
    %112 = arith.addf %108, %111 : vector<8x1xf32>
    %113 = math.rsqrt %112 : vector<8x1xf32>
    %114 = vector.broadcast %113 : vector<8x1xf32> to vector<8x256xf32>
    %115 = vector.broadcast %96 : vector<1x256xf32> to vector<8x256xf32>
    %116 = arith.mulf %114, %115 : vector<8x256xf32>
    %117 = arith.mulf %110, %116 : vector<8x256xf32>
    %118 = vector.broadcast %97 : vector<1x256xf32> to vector<8x256xf32>
    %119 = arith.addf %117, %118 : vector<8x256xf32>
    %120 = arith.truncf %119 : vector<8x256xf32> to vector<8x256xbf16>
    %c0_47 = arith.constant 0 : index
    %c0_48 = arith.constant 0 : index
    %121 = vector.load %arg7[%c0_47, %c0_48] : memref<256x256xbf16, #tpu.memory_space<vmem>>, vector<256x256xbf16>
    %cst_49 = arith.constant dense<0.000000e+00> : vector<8x256xf32>
    %122 = tpu.matmul %120, %121, %cst_49 {dimension_numbers = #tpu.dot_dimension_numbers<[1], [0], [0], [1], [0, 0, 1, 1], [], []>} : vector<8x256xbf16>, vector<256x256xbf16>, vector<8x256xf32> -> vector<8x256xf32>
    %c10 = arith.constant 10 : index
    %c0_50 = arith.constant 0 : index
    %123 = vector.load %arg8[%c10, %c0_50] : memref<16x256xf32, #tpu.memory_space<vmem>>, vector<1x256xf32>
    %124 = vector.broadcast %123 : vector<1x256xf32> to vector<8x256xf32>
    %125 = arith.addf %122, %124 : vector<8x256xf32>
    %cst_51 = arith.constant 0.000000e+00 : f32
    %126 = vector.broadcast %cst_51 : f32 to vector<8x256xf32>
    %127 = arith.maximumf %125, %126 : vector<8x256xf32>
    %c11 = arith.constant 11 : index
    %c0_52 = arith.constant 0 : index
    %128 = vector.load %arg8[%c11, %c0_52] : memref<16x256xf32, #tpu.memory_space<vmem>>, vector<1x256xf32>
    %c12 = arith.constant 12 : index
    %c0_53 = arith.constant 0 : index
    %129 = vector.load %arg8[%c12, %c0_53] : memref<16x256xf32, #tpu.memory_space<vmem>>, vector<1x1xf32>
    %130 = vector.broadcast %128 : vector<1x256xf32> to vector<8x256xf32>
    %131 = arith.mulf %127, %130 : vector<8x256xf32>
    %cst_54 = arith.constant dense<0.000000e+00> : vector<8xf32>
    %132 = vector.multi_reduction <add>, %131, %cst_54 [1] : vector<8x256xf32> to vector<8xf32>
    %133 = vector.shape_cast %132 : vector<8xf32> to vector<8x1xf32>
    %134 = vector.broadcast %129 : vector<1x1xf32> to vector<8x1xf32>
    %135 = arith.addf %133, %134 : vector<8x1xf32>
    %136 = vector.shape_cast %135 : vector<8x1xf32> to vector<8x1xf32>
    %137 = vector.broadcast %136 : vector<8x1xf32> to vector<8x128xf32>
    %c0_55 = arith.constant 0 : index
    %c0_56 = arith.constant 0 : index
    %138 = vector.load %arg9[%c0_55, %c0_56] : memref<8x128xf32, #tpu.memory_space<vmem>>, vector<8x128xf32>
    tpu.vector_store %arg9[%c0_55, %c0_56], %137 {strides = array<i32>} : memref<8x128xf32, #tpu.memory_space<vmem>>, vector<8x128xf32>,
    return
  }
  func.func @transform_0(%arg0: i32) -> (i32, i32) {
    %c0_i32 = arith.constant 0 : i32
    %c0_i32_0 = arith.constant 0 : i32
    %c0_i32_1 = arith.constant 0 : i32
    return %c0_i32, %c0_i32_0 : i32, i32
  }
  func.func @transform_1(%arg0: i32) -> (i32, i32) {
    %c0_i32 = arith.constant 0 : i32
    %c0_i32_0 = arith.constant 0 : i32
    return %arg0, %c0_i32 : i32, i32
  }
  func.func @transform_2(%arg0: i32) -> (i32, i32) {
    %c0_i32 = arith.constant 0 : i32
    %c0_i32_0 = arith.constant 0 : i32
    return %arg0, %c0_i32 : i32, i32
  }
  func.func @transform_3(%arg0: i32) -> (i32, i32) {
    %c0_i32 = arith.constant 0 : i32
    %c0_i32_0 = arith.constant 0 : i32
    %c0_i32_1 = arith.constant 0 : i32
    return %c0_i32, %c0_i32_0 : i32, i32
  }
  func.func @transform_4(%arg0: i32) -> (i32, i32) {
    %c0_i32 = arith.constant 0 : i32
    %c0_i32_0 = arith.constant 0 : i32
    %c0_i32_1 = arith.constant 0 : i32
    return %c0_i32, %c0_i32_0 : i32, i32
  }
  func.func @transform_5(%arg0: i32) -> (i32, i32) {
    %c0_i32 = arith.constant 0 : i32
    %c0_i32_0 = arith.constant 0 : i32
    %c0_i32_1 = arith.constant 0 : i32
    return %c0_i32, %c0_i32_0 : i32, i32
  }
  func.func @transform_6(%arg0: i32) -> (i32, i32) {
    %c0_i32 = arith.constant 0 : i32
    %c0_i32_0 = arith.constant 0 : i32
    %c0_i32_1 = arith.constant 0 : i32
    return %c0_i32, %c0_i32_0 : i32, i32
  }
  func.func @transform_7(%arg0: i32) -> (i32, i32) {
    %c0_i32 = arith.constant 0 : i32
    %c0_i32_0 = arith.constant 0 : i32
    %c0_i32_1 = arith.constant 0 : i32
    return %c0_i32, %c0_i32_0 : i32, i32
  }
  func.func @transform_8(%arg0: i32) -> (i32, i32) {
    %c0_i32 = arith.constant 0 : i32
    %c0_i32_0 = arith.constant 0 : i32
    return %arg0, %c0_i32 : i32, i32
  }
}

</mosaic_0001>

<llo_original>
// kernel: critic_forward.1
$region0: #{critic_forward.1}
  #allocation0 [shape = 'u32[]', space=smem, size = 0x4, offset = 0x4, fixed_abs, tag = 'smem constant byte address 0x4 - core index']
  #allocation1 [shape = 'u32[144,128]{1,0:T(1,128)}', space=vmem, size = 0x12000, scoped, tag = 'internal scratch']
  #allocation2 [shape = 'f32[1,1]{1,0:T(1,128)S(6)}', space=smem, size = 0x200, scoped, tag = 'scoped memory for critic_forward.1']
  %s0 = inlined_call_operand.<no memory space> [shape: f32[1,1], index: 0, kind: input, shape index: {}]
  %s1 = inlined_call_operand.hbm [shape: f32[8,16], index: 1, kind: input, shape index: {}]
  %s2 = inlined_call_operand.vmem [shape: f32[8,4], index: 2, kind: input, shape index: {}]
  %s3 = inlined_call_operand.vmem [shape: f32[16,256], index: 3, kind: input, shape index: {}]
  %s4 = inlined_call_operand.hbm [shape: f32[4,256], index: 4, kind: input, shape index: {}]
  %s5 = inlined_call_operand.hbm [shape: bf16[256,256], index: 5, kind: input, shape index: {}]
  %s6 = inlined_call_operand.hbm [shape: bf16[256,256], index: 6, kind: input, shape index: {}]
  %s7 = inlined_call_operand.hbm [shape: f32[16,256], index: 7, kind: input, shape index: {}]
  %s8 = inlined_call_operand.vmem [shape: f32[8,128], index: 8, kind: output, shape index: {}]
  %s9 = sld [smem:[#allocation0]]
  $region62: #{critic_forward.1} parent=0
    _
  %s11 = ssub.s32 1, %s9
  %s12 = scalar_select 0, %s11, %s9
  %13 = sst [smem:[#allocation2]] %s0
  $region1: #{critic_forward.1} parent=0
    #allocation3 [shape = 'u8[4096]{0}', space=vmem, size = 0x1000, scoped, tag = 'input window, operand 1, single buffered']
    #allocation4 [shape = 's32[1]{0}', space=sflag, size = 0x4, scoped, tag = 'scoped memory for critic_forward.1']
    #allocation5 [shape = 'u8[4096]{0}', space=vmem, size = 0x1000, scoped, tag = 'input window, operand 4, single buffered']
    #allocation6 [shape = 's32[1]{0}', space=sflag, size = 0x4, scoped, tag = 'scoped memory for critic_forward.1']
    #allocation7 [shape = 'u8[131072]{0}', space=vmem, size = 0x20000, scoped, tag = 'input window, operand 5, single buffered']
    #allocation8 [shape = 'u8[131072]{0}', space=vmem, size = 0x20000, scoped, tag = 'input window, operand 6, single buffered']
    #allocation9 [shape = 's32[1]{0}', space=sflag, size = 0x4, scoped, tag = 'scoped memory for critic_forward.1']
    #allocation10 [shape = 'u8[16384]{0}', space=vmem, size = 0x4000, scoped, tag = 'input window, operand 7, single buffered']
    %14 = vsyncpa [#allocation4], 0
    %15 = vsyncpa [#allocation6], 0
    %16 = vsyncpa [#allocation9], 0
    // Predicated region
    $region2: #{critic_forward.1} parent=1 // pred_check
      _
    $region3: #{critic_forward.1} parent=1 // pred_check_branch
      %18 = sbr.rel (0) target = $region5
    $region4: #{critic_forward.1} parent=1 // pred_region
      _
    $region5: #{critic_forward.1} parent=1 // pred_fallthru
      _
    // Predicated region
    $region6: #{critic_forward.1} parent=1 // pred_check
      _
    $region7: #{critic_forward.1} parent=1 // pred_check_branch
      %20 = sbr.rel (0) target = $region9
    $region8: #{critic_forward.1} parent=1 // pred_region
      %s22 = ssub.s32 128, 128
      %23 = vsyncadd [#allocation4], %s22
      %s25 = sshll.u32 [#allocation3], 4
      %s26 = int_to_ptr.vmem [resolvable:$true] %s25
      %28 = dma.hbm_to_vmem [thread:$0]  %s1, 128, %s26, [#allocation4]
    $region9: #{critic_forward.1} parent=1 // pred_fallthru
      _
    // Predicated region
    $region10: #{critic_forward.1} parent=1 // pred_check
      _
    $region11: #{critic_forward.1} parent=1 // pred_check_branch
      %30 = sbr.rel (0) target = $region13
    $region12: #{critic_forward.1} parent=1 // pred_region
      _
    $region13: #{critic_forward.1} parent=1 // pred_fallthru
      _
    // Predicated region
    $region14: #{critic_forward.1} parent=1 // pred_check
      _
    $region15: #{critic_forward.1} parent=1 // pred_check_branch
      %32 = sbr.rel (0) target = $region17
    $region16: #{critic_forward.1} parent=1 // pred_region
      _
    $region17: #{critic_forward.1} parent=1 // pred_fallthru
      _
    // Predicated region
    $region18: #{critic_forward.1} parent=1 // pred_check
      _
    $region19: #{critic_forward.1} parent=1 // pred_check_branch
      %34 = sbr.rel (0) target = $region21
    $region20: #{critic_forward.1} parent=1 // pred_region
      %s36 = ssub.s32 128, 128
      %37 = vsyncadd [#allocation6], %s36
      %s39 = sshll.u32 [#allocation5], 4
      %s40 = int_to_ptr.vmem [resolvable:$true] %s39
      %42 = dma.hbm_to_vmem [thread:$0]  %s4, 128, %s40, [#allocation6]
    $region21: #{critic_forward.1} parent=1 // pred_fallthru
      _
    // Predicated region
    $region22: #{critic_forward.1} parent=1 // pred_check
      _
    $region23: #{critic_forward.1} parent=1 // pred_check_branch
      %44 = sbr.rel (0) target = $region25
    $region24: #{critic_forward.1} parent=1 // pred_region
      %s46 = ssub.s32 4096, 4096
      %47 = vsyncadd [#allocation6], %s46
      %s48 = sshll.u32 [#allocation7], 4
      %s49 = int_to_ptr.vmem [resolvable:$true] %s48
      %54 = dma.hbm_to_vmem [thread:$0]  %s5, 4096, %s49, [#allocation6], 128, 128, 8
    $region25: #{critic_forward.1} parent=1 // pred_fallthru
      _
    // Predicated region
    $region26: #{critic_forward.1} parent=1 // pred_check
      _
    $region27: #{critic_forward.1} parent=1 // pred_check_branch
      %56 = sbr.rel (0) target = $region29
    $region28: #{critic_forward.1} parent=1 // pred_region
      %s58 = ssub.s32 4096, 4096
      %59 = vsyncadd [#allocation9], %s58
      %s60 = sshll.u32 [#allocation8], 4
      %s61 = int_to_ptr.vmem [resolvable:$true] %s60
      %66 = dma.hbm_to_vmem [thread:$0]  %s6, 4096, %s61, [#allocation9], 128, 128, 8
    $region29: #{critic_forward.1} parent=1 // pred_fallthru
      _
    // Predicated region
    $region30: #{critic_forward.1} parent=1 // pred_check
      _
    $region31: #{critic_forward.1} parent=1 // pred_check_branch
      %68 = sbr.rel (0) target = $region33
    $region32: #{critic_forward.1} parent=1 // pred_region
      %s70 = ssub.s32 512, 512
      %71 = vsyncadd [#allocation9], %s70
      %s72 = sshll.u32 [#allocation10], 4
      %s73 = int_to_ptr.vmem [resolvable:$true] %s72
      %78 = dma.hbm_to_vmem [thread:$0]  %s7, 512, %s73, [#allocation9], 256, 256, 16
    $region33: #{critic_forward.1} parent=1 // pred_fallthru
      _
    // Predicated region
    $region34: #{critic_forward.1} parent=1 // pred_check
      _
    $region35: #{critic_forward.1} parent=1 // pred_check_branch
      %80 = sbr.rel (0) target = $region37
    $region36: #{critic_forward.1} parent=1 // pred_region
      %81 = dma.done [#allocation4], 128
    $region37: #{critic_forward.1} parent=1 // pred_fallthru
      _
    // Predicated region
    $region38: #{critic_forward.1} parent=1 // pred_check
      _
    $region39: #{critic_forward.1} parent=1 // pred_check_branch
      %83 = sbr.rel (0) target = $region41
    $region40: #{critic_forward.1} parent=1 // pred_region
      %84 = dma.done [#allocation6], 128
    $region41: #{critic_forward.1} parent=1 // pred_fallthru
      _
    // Predicated region
    $region42: #{critic_forward.1} parent=1 // pred_check
      _
    $region43: #{critic_forward.1} parent=1 // pred_check_branch
      %86 = sbr.rel (0) target = $region45
    $region44: #{critic_forward.1} parent=1 // pred_region
      %87 = dma.done [#allocation6], 4096
    $region45: #{critic_forward.1} parent=1 // pred_fallthru
      _
    // Predicated region
    $region46: #{critic_forward.1} parent=1 // pred_check
      _
    $region47: #{critic_forward.1} parent=1 // pred_check_branch
      %89 = sbr.rel (0) target = $region49
    $region48: #{critic_forward.1} parent=1 // pred_region
      %90 = dma.done [#allocation9], 4096
    $region49: #{critic_forward.1} parent=1 // pred_fallthru
      _
    // Predicated region
    $region50: #{critic_forward.1} parent=1 // pred_check
      _
    $region51: #{critic_forward.1} parent=1 // pred_check_branch
      %92 = sbr.rel (0) target = $region53
    $region52: #{critic_forward.1} parent=1 // pred_region
      %93 = dma.done [#allocation9], 512
    $region53: #{critic_forward.1} parent=1 // pred_fallthru
      _
    %s94 = sld [smem:[#allocation2]]
    %v95 = vld [vmem:[#allocation3] sm:$0xff]
    %v96 = vld [vmem:[%s2] sm:$0xff]
    %v97 = vstv %s94
    %v98 = vmul.f32 %v96, %v97
    %vm99 = vcmask 130048
    %v100 = vsel %vm99, %v95, 0.0
    %101 = vadd.xlane.f32.xlu0 %v100
    %v102 = vpop.xlane.xlu0 %101
    %vm103 = vcmask 31744
    %v104 = vsel %vm103, %v98, 0.0
    %105 = vadd.xlane.f32.xlu0 %v104
    %v106 = vpop.xlane.xlu0 %105
    %v107 = vadd.f32 %v102, %v106
    %v108 = vmul.f32 %v107, 0.05
    %v109 = vmul.f32 %v95, %v95
    %v110 = vsel %vm99, %v109, 0.0
    %111 = vadd.xlane.f32.xlu0 %v110
    %v112 = vpop.xlane.xlu0 %111
    %v113 = vmul.f32 %v98, %v98
    %v114 = vsel %vm103, %v113, 0.0
    %115 = vadd.xlane.f32.xlu0 %v114
    %v116 = vpop.xlane.xlu0 %115
    %v117 = vadd.f32 %v112, %v116
    %v118 = vmul.f32 %v117, 0.05
    %v119 = vmul.f32 %v108, %v108
    %v120 = vsub.f32 %v118, %v119
    %v121 = vadd.f32 %v120, 1e-05
    %v122 = vrsqrt.pop %v121
    %v123 = vld [vmem:[#allocation10] ss:$0 sm:$0xff]
    %v124 = vld [vmem:[#allocation10 + $0x1] ss:$0 sm:$0xff]
    %v125 = vld [vmem:[#allocation10 + $0x2] ss:$0 sm:$0xff]
    %v126 = vld [vmem:[#allocation10 + $0x3] ss:$0 sm:$0xff]
    %v127 = vsub.f32 %v95, %v108
    %v128 = vmul.f32 %v127, %v122
    %v129 = vmul.f32 %v128, %v123
    %v130 = vadd.f32 %v129, %v125
    %v131 = vmax.f32 %v130, -3.0
    %v132 = vmin.f32 %v131, 3.0
    %v133 = vsub.f32 %v98, %v108
    %v134 = vmul.f32 %v133, %v122
    %v135 = vmul.f32 %v134, %v124
    %v136 = vadd.f32 %v135, %v126
    %v137 = vmax.f32 %v136, -3.0
    %v138 = vmin.f32 %v137, 3.0
    %s139 = scalar_lea.vmem [#allocation10], 4
    %v140 = vld [vmem:[%s139] ss:$8 sm:$0x3]
    %v141 = vld [vmem:[%s3] sm:$0xff]
    %v142 = vld [vmem:[%s3 + $0x8] sm:$0xff]
    %v143 = vld [vmem:[%s3 + $0x10] sm:$0xff]
    %v144 = vld [vmem:[%s3 + $0x18] sm:$0xff]
    %v145 = vld [vmem:[#allocation5] sm:$0xff]
    %v147 = vcombine.high %v145, %v145
    %v149 = vsel %vm103, %v138, 0
    %vm151 = vcmask 1043456
    %v152 = vsel %vm151, %v145, 0
    %v154 = vsel %vm151, %v147, 0
    %156 = vmatprep.subr.mxu0 %v154
    %157 = vmatpush1.msra.mxu0 %v152
    %158 = vmatprep.subr.mxu0 0.0
    %159 = vmatpush1.msra.mxu0 0.0
    %160 = vmatprep.subr.mxu0 0.0
    %161 = vmatpush1.msra.mxu0 0.0
    %162 = vmatprep.subr.mxu0 0.0
    %163 = vmatpush1.msra.mxu0 0.0
    %164 = vmatprep.subr.mxu0 0.0
    %165 = vmatpush1.msra.mxu0 0.0
    %166 = vmatprep.subr.mxu0 0.0
    %167 = vmatpush1.msra.mxu0 0.0
    %168 = vmatprep.subr.mxu0 0.0
    %169 = vmatpush1.msra.mxu0 0.0
    %170 = vmatprep.subr.mxu0 0.0
    %171 = vmatpush1.msra.mxu0 0.0
    %172 = vmatprep.subr.mxu0 0.0
    %173 = vmatpush1.msra.mxu0 0.0
    %174 = vmatprep.subr.mxu0 0.0
    %175 = vmatpush1.msra.mxu0 0.0
    %176 = vmatprep.subr.mxu0 0.0
    %177 = vmatpush1.msra.mxu0 0.0
    %178 = vmatprep.subr.mxu0 0.0
    %179 = vmatpush1.msra.mxu0 0.0
    %180 = vmatprep.subr.mxu0 0.0
    %181 = vmatpush1.msra.mxu0 0.0
    %182 = vmatprep.subr.mxu0 0.0
    %183 = vmatpush1.msra.mxu0 0.0
    %184 = vmatprep.subr.mxu0 0.0
    %185 = vmatpush1.msra.mxu0 0.0
    %186 = vmatprep.subr.mxu0 0.0
    %187 = vmatpush1.msra.mxu0 0.0
    %188 = vmatprep.subr.mxu0 0.0
    %189 = vmatpush1.msra.mxu0 0.0
    %190 = vmatprep.subr.mxu0 0.0
    %191 = vmatpush1.msra.mxu0 0.0
    %192 = vmatprep.subr.mxu0 0.0
    %193 = vmatpush1.msra.mxu0 0.0
    %194 = vmatprep.subr.mxu0 0.0
    %195 = vmatpush1.msra.mxu0 0.0
    %196 = vmatprep.subr.mxu0 0.0
    %197 = vmatpush1.msra.mxu0 0.0
    %198 = vmatprep.subr.mxu0 0.0
    %199 = vmatpush1.msra.mxu0 0.0
    %200 = vmatprep.subr.mxu0 0.0
    %201 = vmatpush1.msra.mxu0 0.0
    %202 = vmatprep.subr.mxu0 0.0
    %203 = vmatpush1.msra.mxu0 0.0
    %204 = vmatprep.subr.mxu0 0.0
    %205 = vmatpush1.msra.mxu0 0.0
    %206 = vmatprep.subr.mxu0 0.0
    %207 = vmatpush1.msra.mxu0 0.0
    %208 = vmatprep.subr.mxu0 0.0
    %209 = vmatpush1.msra.mxu0 0.0
    %210 = vmatprep.subr.mxu0 0.0
    %211 = vmatpush1.msra.mxu0 0.0
    %212 = vmatprep.subr.mxu0 0.0
    %213 = vmatpush1.msra.mxu0 0.0
    %214 = vmatprep.subr.mxu0 0.0
    %215 = vmatpush1.msra.mxu0 0.0
    %216 = vmatprep.subr.mxu0 0.0
    %217 = vmatpush1.msra.mxu0 0.0
    %218 = vmatprep.subr.mxu0 0.0
    %219 = vmatpush1.msra.mxu0 0.0
    %220 = vmatprep.mubr.f32.mxu0 0.0
    %221 = vmatmul.mubr.f32.gmra.mrb[0].mxu0 %v149
    %v222 = vpop.f32.mrb[0].mxu0
    %v223 = vadd.f32 0.0, %v222
    %v224 = vpop.f32.mrb[0].mxu0
    %v225 = vadd.f32 0.0, %v224
    %226 = vdwg.mxu0
    %v228 = vsel %vm99, %v132, 0
    %230 = vmatprep.subr.mxu0 %v142
    %231 = vmatpush1.msra.mxu0 %v141
    %232 = vmatprep.subr.mxu0 %v144
    %233 = vmatpush1.msra.mxu0 %v143
    %234 = vmatprep.subr.mxu0 0.0
    %235 = vmatpush1.msra.mxu0 0.0
    %236 = vmatprep.subr.mxu0 0.0
    %237 = vmatpush1.msra.mxu0 0.0
    %238 = vmatprep.subr.mxu0 0.0
    %239 = vmatpush1.msra.mxu0 0.0
    %240 = vmatprep.subr.mxu0 0.0
    %241 = vmatpush1.msra.mxu0 0.0
    %242 = vmatprep.subr.mxu0 0.0
    %243 = vmatpush1.msra.mxu0 0.0
    %244 = vmatprep.subr.mxu0 0.0
    %245 = vmatpush1.msra.mxu0 0.0
    %246 = vmatprep.subr.mxu0 0.0
    %247 = vmatpush1.msra.mxu0 0.0
    %248 = vmatprep.subr.mxu0 0.0
    %249 = vmatpush1.msra.mxu0 0.0
    %250 = vmatprep.subr.mxu0 0.0
    %251 = vmatpush1.msra.mxu0 0.0
    %252 = vmatprep.subr.mxu0 0.0
    %253 = vmatpush1.msra.mxu0 0.0
    %254 = vmatprep.subr.mxu0 0.0
    %255 = vmatpush1.msra.mxu0 0.0
    %256 = vmatprep.subr.mxu0 0.0
    %257 = vmatpush1.msra.mxu0 0.0
    %258 = vmatprep.subr.mxu0 0.0
    %259 = vmatpush1.msra.mxu0 0.0
    %260 = vmatprep.subr.mxu0 0.0
    %261 = vmatpush1.msra.mxu0 0.0
    %262 = vmatprep.subr.mxu0 0.0
    %263 = vmatpush1.msra.mxu0 0.0
    %264 = vmatprep.subr.mxu0 0.0
    %265 = vmatpush1.msra.mxu0 0.0
    %266 = vmatprep.subr.mxu0 0.0
    %267 = vmatpush1.msra.mxu0 0.0
    %268 = vmatprep.subr.mxu0 0.0
    %269 = vmatpush1.msra.mxu0 0.0
    %270 = vmatprep.subr.mxu0 0.0
    %271 = vmatpush1.msra.mxu0 0.0
    %272 = vmatprep.subr.mxu0 0.0
    %273 = vmatpush1.msra.mxu0 0.0
    %274 = vmatprep.subr.mxu0 0.0
    %275 = vmatpush1.msra.mxu0 0.0
    %276 = vmatprep.subr.mxu0 0.0
    %277 = vmatpush1.msra.mxu0 0.0
    %278 = vmatprep.subr.mxu0 0.0
    %279 = vmatpush1.msra.mxu0 0.0
    %280 = vmatprep.subr.mxu0 0.0
    %281 = vmatpush1.msra.mxu0 0.0
    %282 = vmatprep.subr.mxu0 0.0
    %283 = vmatpush1.msra.mxu0 0.0
    %284 = vmatprep.subr.mxu0 0.0
    %285 = vmatpush1.msra.mxu0 0.0
    %286 = vmatprep.subr.mxu0 0.0
    %287 = vmatpush1.msra.mxu0 0.0
    %288 = vmatprep.subr.mxu0 0.0
    %289 = vmatpush1.msra.mxu0 0.0
    %290 = vmatprep.subr.mxu0 0.0
    %291 = vmatpush1.msra.mxu0 0.0
    %292 = vmatprep.subr.mxu0 0.0
    %293 = vmatpush1.msra.mxu0 0.0
    %294 = vmatprep.mubr.f32.mxu0 0.0
    %295 = vmatmul.mubr.f32.gmra.mrb[0].mxu0 %v228
    %v296 = vpop.f32.mrb[0].mxu0
    %v297 = vadd.f32 %v223, %v296
    %v298 = vpop.f32.mrb[0].mxu0
    %v299 = vadd.f32 %v225, %v298
    %300 = vdwg.mxu0
    %v302 = vlaneseq
    %v303 = vshrl.u32 %v302, 7
    %v304 = vsub.s32 0, %v303
    %v305 = vrot.slane %v140, %v304
    %v306 = vlaneseq
    %v307 = vshrl.u32 %v306, 7
    %v308 = vsub.s32 1, %v307
    %v309 = vrot.slane %v140, %v308
    %v312 = vadd.f32 %v297, %v305
    %v313 = vadd.f32 %v299, %v309
    %v314 = vmax.f32 %v312, 0.0
    %v315 = vmax.f32 %v313, 0.0
    %s316 = scalar_lea.vmem [#allocation10], 5
    %v317 = vld [vmem:[%s316] ss:$8 sm:$0x3]
    %s318 = scalar_lea.vmem [#allocation10], 6
    %v319 = vld [vmem:[%s318] ss:$8 sm:$0x3]
    %v320 = vadd.f32 %v314, %v315
    %321 = vadd.xlane.f32.xlu0 %v320
    %v322 = vpop.xlane.xlu0 %321
    %v323 = vrcp.pop 256.0
    %v324 = vmul.f32 %v322, %v323
    %v325 = vmul.f32 %v314, %v314
    %v326 = vmul.f32 %v315, %v315
    %v327 = vadd.f32 %v325, %v326
    %328 = vadd.xlane.f32.xlu0 %v327
    %v329 = vpop.xlane.xlu0 %328
    %v330 = vmul.f32 %v329, %v323
    %v331 = vmul.f32 %v324, %v324
    %v332 = vsub.f32 %v330, %v331
    %v333 = vsub.f32 %v314, %v324
    %v334 = vsub.f32 %v315, %v324
    %v335 = vadd.f32 %v332, 1e-05
    %v336 = vrsqrt.pop %v335
    %v338 = vlaneseq
    %v339 = vshrl.u32 %v338, 7
    %v340 = vsub.s32 0, %v339
    %v341 = vrot.slane %v317, %v340
    %v342 = vlaneseq
    %v343 = vshrl.u32 %v342, 7
    %v344 = vsub.s32 1, %v343
    %v345 = vrot.slane %v317, %v344
    %v348 = vmul.f32 %v336, %v341
    %v349 = vmul.f32 %v336, %v345
    %v350 = vmul.f32 %v333, %v348
    %v351 = vmul.f32 %v334, %v349
    %v353 = vlaneseq
    %v354 = vshrl.u32 %v353, 7
    %v355 = vsub.s32 0, %v354
    %v356 = vrot.slane %v319, %v355
    %v357 = vlaneseq
    %v358 = vshrl.u32 %v357, 7
    %v359 = vsub.s32 1, %v358
    %v360 = vrot.slane %v319, %v359
    %v363 = vadd.f32 %v350, %v356
    %v364 = vadd.f32 %v351, %v360
    %v365 = vpack.c.bf16 %v363, %v363
    %v366 = vpack.c.bf16 %v364, %v364
    %v367 = vld [vmem:[#allocation7] sm:$0xff]
    %v368 = vld [vmem:[#allocation7 + $0x8] sm:$0xff]
    %v369 = vld [vmem:[#allocation7 + $0x10] sm:$0xff]
    %v370 = vld [vmem:[#allocation7 + $0x18] sm:$0xff]
    %v371 = vld [vmem:[#allocation7 + $0x20] sm:$0xff]
    %v372 = vld [vmem:[#allocation7 + $0x28] sm:$0xff]
    %v373 = vld [vmem:[#allocation7 + $0x30] sm:$0xff]
    %v374 = vld [vmem:[#allocation7 + $0x38] sm:$0xff]
    %v375 = vld [vmem:[#allocation7 + $0x40] sm:$0xff]
    %v376 = vld [vmem:[#allocation7 + $0x48] sm:$0xff]
    %v377 = vld [vmem:[#allocation7 + $0x50] sm:$0xff]
    %v378 = vld [vmem:[#allocation7 + $0x58] sm:$0xff]
    %v379 = vld [vmem:[#allocation7 + $0x60] sm:$0xff]
    %v380 = vld [vmem:[#allocation7 + $0x68] sm:$0xff]
    %v381 = vld [vmem:[#allocation7 + $0x70] sm:$0xff]
    %v382 = vld [vmem:[#allocation7 + $0x78] sm:$0xff]
    %v383 = vld [vmem:[#allocation7 + $0x80] sm:$0xff]
    %v384 = vld [vmem:[#allocation7 + $0x88] sm:$0xff]
    %v385 = vld [vmem:[#allocation7 + $0x90] sm:$0xff]
    %v386 = vld [vmem:[#allocation7 + $0x98] sm:$0xff]
    %v387 = vld [vmem:[#allocation7 + $0xa0] sm:$0xff]
    %v388 = vld [vmem:[#allocation7 + $0xa8] sm:$0xff]
    %v389 = vld [vmem:[#allocation7 + $0xb0] sm:$0xff]
    %v390 = vld [vmem:[#allocation7 + $0xb8] sm:$0xff]
    %v391 = vld [vmem:[#allocation7 + $0xc0] sm:$0xff]
    %v392 = vld [vmem:[#allocation7 + $0xc8] sm:$0xff]
    %v393 = vld [vmem:[#allocation7 + $0xd0] sm:$0xff]
    %v394 = vld [vmem:[#allocation7 + $0xd8] sm:$0xff]
    %v395 = vld [vmem:[#allocation7 + $0xe0] sm:$0xff]
    %v396 = vld [vmem:[#allocation7 + $0xe8] sm:$0xff]
    %v397 = vld [vmem:[#allocation7 + $0xf0] sm:$0xff]
    %v398 = vld [vmem:[#allocation7 + $0xf8] sm:$0xff]
    %s399 = scalar_lea.vmem [#allocation10], 7
    %v400 = vld [vmem:[%s399] ss:$8 sm:$0x3]
    %v402 = vlaneseq
    %v403 = vshrl.u32 %v402, 7
    %v404 = vsub.s32 0, %v403
    %v405 = vrot.slane %v400, %v404
    %v406 = vlaneseq
    %v407 = vshrl.u32 %v406, 7
    %v408 = vsub.s32 1, %v407
    %v409 = vrot.slane %v400, %v408
    %v444 = vunpack.c.l.b16 %v367
    %v445 = vunpack.c.h.b16 %v367
    %v446 = vunpack.c.l.b16 %v368
    %v447 = vunpack.c.h.b16 %v368
    %v448 = vunpack.c.l.b16 %v369
    %v449 = vunpack.c.h.b16 %v369
    %v450 = vunpack.c.l.b16 %v370
    %v451 = vunpack.c.h.b16 %v370
    %v452 = vunpack.c.l.b16 %v371
    %v453 = vunpack.c.h.b16 %v371
    %v454 = vunpack.c.l.b16 %v372
    %v455 = vunpack.c.h.b16 %v372
    %v456 = vunpack.c.l.b16 %v373
    %v457 = vunpack.c.h.b16 %v373
    %v458 = vunpack.c.l.b16 %v374
    %v459 = vunpack.c.h.b16 %v374
    %v460 = vunpack.c.l.b16 %v375
    %v461 = vunpack.c.h.b16 %v375
    %v462 = vunpack.c.l.b16 %v376
    %v463 = vunpack.c.h.b16 %v376
    %v464 = vunpack.c.l.b16 %v377
    %v465 = vunpack.c.h.b16 %v377
    %v466 = vunpack.c.l.b16 %v378
    %v467 = vunpack.c.h.b16 %v378
    %v468 = vunpack.c.l.b16 %v379
    %v469 = vunpack.c.h.b16 %v379
    %v470 = vunpack.c.l.b16 %v380
    %v471 = vunpack.c.h.b16 %v380
    %v472 = vunpack.c.l.b16 %v381
    %v473 = vunpack.c.h.b16 %v381
    %v474 = vunpack.c.l.b16 %v382
    %v475 = vunpack.c.h.b16 %v382
    %v476 = vunpack.c.l.b16 %v383
    %v477 = vunpack.c.h.b16 %v383
    %v478 = vunpack.c.l.b16 %v384
    %v479 = vunpack.c.h.b16 %v384
    %v480 = vunpack.c.l.b16 %v385
    %v481 = vunpack.c.h.b16 %v385
    %v482 = vunpack.c.l.b16 %v386
    %v483 = vunpack.c.h.b16 %v386
    %v484 = vunpack.c.l.b16 %v387
    %v485 = vunpack.c.h.b16 %v387
    %v486 = vunpack.c.l.b16 %v388
    %v487 = vunpack.c.h.b16 %v388
    %v488 = vunpack.c.l.b16 %v389
    %v489 = vunpack.c.h.b16 %v389
    %v490 = vunpack.c.l.b16 %v390
    %v491 = vunpack.c.h.b16 %v390
    %v492 = vunpack.c.l.b16 %v391
    %v493 = vunpack.c.h.b16 %v391
    %v494 = vunpack.c.l.b16 %v392
    %v495 = vunpack.c.h.b16 %v392
    %v496 = vunpack.c.l.b16 %v393
    %v497 = vunpack.c.h.b16 %v393
    %v498 = vunpack.c.l.b16 %v394
    %v499 = vunpack.c.h.b16 %v394
    %v500 = vunpack.c.l.b16 %v395
    %v501 = vunpack.c.h.b16 %v395
    %v502 = vunpack.c.l.b16 %v396
    %v503 = vunpack.c.h.b16 %v396
    %v504 = vunpack.c.l.b16 %v397
    %v505 = vunpack.c.h.b16 %v397
    %v506 = vunpack.c.l.b16 %v398
    %v507 = vunpack.c.h.b16 %v398
    %v508 = vpack.c.b16 %v446, %v444
    %v509 = vpack.c.b16 %v447, %v445
    %v510 = vpack.c.b16 %v450, %v448
    %v511 = vpack.c.b16 %v451, %v449
    %v512 = vpack.c.b16 %v454, %v452
    %v513 = vpack.c.b16 %v455, %v453
    %v514 = vpack.c.b16 %v458, %v456
    %v515 = vpack.c.b16 %v459, %v457
    %v516 = vpack.c.b16 %v462, %v460
    %v517 = vpack.c.b16 %v463, %v461
    %v518 = vpack.c.b16 %v466, %v464
    %v519 = vpack.c.b16 %v467, %v465
    %v520 = vpack.c.b16 %v470, %v468
    %v521 = vpack.c.b16 %v471, %v469
    %v522 = vpack.c.b16 %v474, %v472
    %v523 = vpack.c.b16 %v475, %v473
    %v524 = vpack.c.b16 %v478, %v476
    %v525 = vpack.c.b16 %v479, %v477
    %v526 = vpack.c.b16 %v482, %v480
    %v527 = vpack.c.b16 %v483, %v481
    %v528 = vpack.c.b16 %v486, %v484
    %v529 = vpack.c.b16 %v487, %v485
    %v530 = vpack.c.b16 %v490, %v488
    %v531 = vpack.c.b16 %v491, %v489
    %v532 = vpack.c.b16 %v494, %v492
    %v533 = vpack.c.b16 %v495, %v493
    %v534 = vpack.c.b16 %v498, %v496
    %v535 = vpack.c.b16 %v499, %v497
    %v536 = vpack.c.b16 %v502, %v500
    %v537 = vpack.c.b16 %v503, %v501
    %v538 = vpack.c.b16 %v506, %v504
    %v539 = vpack.c.b16 %v507, %v505
    %572 = vmatprep.subr.bf16.mxu0 %v509
    %573 = vmatpush1.bf16.msra.mxu0 %v508
    %574 = vmatprep.subr.bf16.mxu0 %v511
    %575 = vmatpush1.bf16.msra.mxu0 %v510
    %576 = vmatprep.subr.bf16.mxu0 %v513
    %577 = vmatpush1.bf16.msra.mxu0 %v512
    %578 = vmatprep.subr.bf16.mxu0 %v515
    %579 = vmatpush1.bf16.msra.mxu0 %v514
    %580 = vmatprep.subr.bf16.mxu0 %v517
    %581 = vmatpush1.bf16.msra.mxu0 %v516
    %582 = vmatprep.subr.bf16.mxu0 %v519
    %583 = vmatpush1.bf16.msra.mxu0 %v518
    %584 = vmatprep.subr.bf16.mxu0 %v521
    %585 = vmatpush1.bf16.msra.mxu0 %v520
    %586 = vmatprep.subr.bf16.mxu0 %v523
    %587 = vmatpush1.bf16.msra.mxu0 %v522
    %588 = vmatprep.subr.bf16.mxu0 %v525
    %589 = vmatpush1.bf16.msra.mxu0 %v524
    %590 = vmatprep.subr.bf16.mxu0 %v527
    %591 = vmatpush1.bf16.msra.mxu0 %v526
    %592 = vmatprep.subr.bf16.mxu0 %v529
    %593 = vmatpush1.bf16.msra.mxu0 %v528
    %594 = vmatprep.subr.bf16.mxu0 %v531
    %595 = vmatpush1.bf16.msra.mxu0 %v530
    %596 = vmatprep.subr.bf16.mxu0 %v533
    %597 = vmatpush1.bf16.msra.mxu0 %v532
    %598 = vmatprep.subr.bf16.mxu0 %v535
    %599 = vmatpush1.bf16.msra.mxu0 %v534
    %600 = vmatprep.subr.bf16.mxu0 %v537
    %601 = vmatpush1.bf16.msra.mxu0 %v536
    %602 = vmatprep.subr.bf16.mxu0 %v539
    %603 = vmatpush1.bf16.msra.mxu0 %v538
    %604 = vmatprep.mubr.bf16.mxu0 %v366
    %605 = vmatmul.mubr.bf16.gmra.mrb[0].mxu0 %v365
    %v606 = vpop.f32.mrb[0].mxu0
    %v607 = vadd.f32 %v405, %v606
    %v608 = vpop.f32.mrb[0].mxu0
    %v609 = vadd.f32 %v409, %v608
    %v610 = vpop.f32.mrb[0].mxu0
    %v611 = vpop.f32.mrb[0].mxu0
    %612 = vdwg.mxu0
    %v613 = vmax.f32 %v607, 0.0
    %v614 = vmax.f32 %v609, 0.0
    %s615 = scalar_lea.vmem [#allocation10], 16
    %v616 = vld [vmem:[%s615] ss:$8 sm:$0x3]
    %s617 = scalar_lea.vmem [#allocation10], 17
    %v618 = vld [vmem:[%s617] ss:$8 sm:$0x3]
    %v619 = vadd.f32 %v613, %v614
    %620 = vadd.xlane.f32.xlu0 %v619
    %v621 = vpop.xlane.xlu0 %620
    %v622 = vmul.f32 %v621, %v323
    %v623 = vmul.f32 %v613, %v613
    %v624 = vmul.f32 %v614, %v614
    %v625 = vadd.f32 %v623, %v624
    %626 = vadd.xlane.f32.xlu0 %v625
    %v627 = vpop.xlane.xlu0 %626
    %v628 = vmul.f32 %v627, %v323
    %v629 = vmul.f32 %v622, %v622
    %v630 = vsub.f32 %v628, %v629
    %v631 = vsub.f32 %v613, %v622
    %v632 = vsub.f32 %v614, %v622
    %v633 = vadd.f32 %v630, 1e-05
    %v634 = vrsqrt.pop %v633
    %v636 = vlaneseq
    %v637 = vshrl.u32 %v636, 7
    %v638 = vsub.s32 0, %v637
    %v639 = vrot.slane %v616, %v638
    %v640 = vlaneseq
    %v641 = vshrl.u32 %v640, 7
    %v642 = vsub.s32 1, %v641
    %v643 = vrot.slane %v616, %v642
    %v646 = vmul.f32 %v634, %v639
    %v647 = vmul.f32 %v634, %v643
    %v648 = vmul.f32 %v631, %v646
    %v649 = vmul.f32 %v632, %v647
    %v651 = vlaneseq
    %v652 = vshrl.u32 %v651, 7
    %v653 = vsub.s32 0, %v652
    %v654 = vrot.slane %v618, %v653
    %v655 = vlaneseq
    %v656 = vshrl.u32 %v655, 7
    %v657 = vsub.s32 1, %v656
    %v658 = vrot.slane %v618, %v657
    %v661 = vadd.f32 %v648, %v654
    %v662 = vadd.f32 %v649, %v658
    %v663 = vpack.c.bf16 %v661, %v661
    %v664 = vpack.c.bf16 %v662, %v662
    %v665 = vld [vmem:[#allocation8] sm:$0xff]
    %v666 = vld [vmem:[#allocation8 + $0x8] sm:$0xff]
    %v667 = vld [vmem:[#allocation8 + $0x10] sm:$0xff]
    %v668 = vld [vmem:[#allocation8 + $0x18] sm:$0xff]
    %v669 = vld [vmem:[#allocation8 + $0x20] sm:$0xff]
    %v670 = vld [vmem:[#allocation8 + $0x28] sm:$0xff]
    %v671 = vld [vmem:[#allocation8 + $0x30] sm:$0xff]
    %v672 = vld [vmem:[#allocation8 + $0x38] sm:$0xff]
    %v673 = vld [vmem:[#allocation8 + $0x40] sm:$0xff]
    %v674 = vld [vmem:[#allocation8 + $0x48] sm:$0xff]
    %v675 = vld [vmem:[#allocation8 + $0x50] sm:$0xff]
    %v676 = vld [vmem:[#allocation8 + $0x58] sm:$0xff]
    %v677 = vld [vmem:[#allocation8 + $0x60] sm:$0xff]
    %v678 = vld [vmem:[#allocation8 + $0x68] sm:$0xff]
    %v679 = vld [vmem:[#allocation8 + $0x70] sm:$0xff]
    %v680 = vld [vmem:[#allocation8 + $0x78] sm:$0xff]
    %v681 = vld [vmem:[#allocation8 + $0x80] sm:$0xff]
    %v682 = vld [vmem:[#allocation8 + $0x88] sm:$0xff]
    %v683 = vld [vmem:[#allocation8 + $0x90] sm:$0xff]
    %v684 = vld [vmem:[#allocation8 + $0x98] sm:$0xff]
    %v685 = vld [vmem:[#allocation8 + $0xa0] sm:$0xff]
    %v686 = vld [vmem:[#allocation8 + $0xa8] sm:$0xff]
    %v687 = vld [vmem:[#allocation8 + $0xb0] sm:$0xff]
    %v688 = vld [vmem:[#allocation8 + $0xb8] sm:$0xff]
    %v689 = vld [vmem:[#allocation8 + $0xc0] sm:$0xff]
    %v690 = vld [vmem:[#allocation8 + $0xc8] sm:$0xff]
    %v691 = vld [vmem:[#allocation8 + $0xd0] sm:$0xff]
    %v692 = vld [vmem:[#allocation8 + $0xd8] sm:$0xff]
    %v693 = vld [vmem:[#allocation8 + $0xe0] sm:$0xff]
    %v694 = vld [vmem:[#allocation8 + $0xe8] sm:$0xff]
    %v695 = vld [vmem:[#allocation8 + $0xf0] sm:$0xff]
    %v696 = vld [vmem:[#allocation8 + $0xf8] sm:$0xff]
    %s697 = scalar_lea.vmem [#allocation10], 18
    %v698 = vld [vmem:[%s697] ss:$8 sm:$0x3]
    %v700 = vlaneseq
    %v701 = vshrl.u32 %v700, 7
    %v702 = vsub.s32 0, %v701
    %v703 = vrot.slane %v698, %v702
    %v704 = vlaneseq
    %v705 = vshrl.u32 %v704, 7
    %v706 = vsub.s32 1, %v705
    %v707 = vrot.slane %v698, %v706
    %v742 = vunpack.c.l.b16 %v665
    %v743 = vunpack.c.h.b16 %v665
    %v744 = vunpack.c.l.b16 %v666
    %v745 = vunpack.c.h.b16 %v666
    %v746 = vunpack.c.l.b16 %v667
    %v747 = vunpack.c.h.b16 %v667
    %v748 = vunpack.c.l.b16 %v668
    %v749 = vunpack.c.h.b16 %v668
    %v750 = vunpack.c.l.b16 %v669
    %v751 = vunpack.c.h.b16 %v669
    %v752 = vunpack.c.l.b16 %v670
    %v753 = vunpack.c.h.b16 %v670
    %v754 = vunpack.c.l.b16 %v671
    %v755 = vunpack.c.h.b16 %v671
    %v756 = vunpack.c.l.b16 %v672
    %v757 = vunpack.c.h.b16 %v672
    %v758 = vunpack.c.l.b16 %v673
    %v759 = vunpack.c.h.b16 %v673
    %v760 = vunpack.c.l.b16 %v674
    %v761 = vunpack.c.h.b16 %v674
    %v762 = vunpack.c.l.b16 %v675
    %v763 = vunpack.c.h.b16 %v675
    %v764 = vunpack.c.l.b16 %v676
    %v765 = vunpack.c.h.b16 %v676
    %v766 = vunpack.c.l.b16 %v677
    %v767 = vunpack.c.h.b16 %v677
    %v768 = vunpack.c.l.b16 %v678
    %v769 = vunpack.c.h.b16 %v678
    %v770 = vunpack.c.l.b16 %v679
    %v771 = vunpack.c.h.b16 %v679
    %v772 = vunpack.c.l.b16 %v680
    %v773 = vunpack.c.h.b16 %v680
    %v774 = vunpack.c.l.b16 %v681
    %v775 = vunpack.c.h.b16 %v681
    %v776 = vunpack.c.l.b16 %v682
    %v777 = vunpack.c.h.b16 %v682
    %v778 = vunpack.c.l.b16 %v683
    %v779 = vunpack.c.h.b16 %v683
    %v780 = vunpack.c.l.b16 %v684
    %v781 = vunpack.c.h.b16 %v684
    %v782 = vunpack.c.l.b16 %v685
    %v783 = vunpack.c.h.b16 %v685
    %v784 = vunpack.c.l.b16 %v686
    %v785 = vunpack.c.h.b16 %v686
    %v786 = vunpack.c.l.b16 %v687
    %v787 = vunpack.c.h.b16 %v687
    %v788 = vunpack.c.l.b16 %v688
    %v789 = vunpack.c.h.b16 %v688
    %v790 = vunpack.c.l.b16 %v689
    %v791 = vunpack.c.h.b16 %v689
    %v792 = vunpack.c.l.b16 %v690
    %v793 = vunpack.c.h.b16 %v690
    %v794 = vunpack.c.l.b16 %v691
    %v795 = vunpack.c.h.b16 %v691
    %v796 = vunpack.c.l.b16 %v692
    %v797 = vunpack.c.h.b16 %v692
    %v798 = vunpack.c.l.b16 %v693
    %v799 = vunpack.c.h.b16 %v693
    %v800 = vunpack.c.l.b16 %v694
    %v801 = vunpack.c.h.b16 %v694
    %v802 = vunpack.c.l.b16 %v695
    %v803 = vunpack.c.h.b16 %v695
    %v804 = vunpack.c.l.b16 %v696
    %v805 = vunpack.c.h.b16 %v696
    %v806 = vpack.c.b16 %v744, %v742
    %v807 = vpack.c.b16 %v745, %v743
    %v808 = vpack.c.b16 %v748, %v746
    %v809 = vpack.c.b16 %v749, %v747
    %v810 = vpack.c.b16 %v752, %v750
    %v811 = vpack.c.b16 %v753, %v751
    %v812 = vpack.c.b16 %v756, %v754
    %v813 = vpack.c.b16 %v757, %v755
    %v814 = vpack.c.b16 %v760, %v758
    %v815 = vpack.c.b16 %v761, %v759
    %v816 = vpack.c.b16 %v764, %v762
    %v817 = vpack.c.b16 %v765, %v763
    %v818 = vpack.c.b16 %v768, %v766
    %v819 = vpack.c.b16 %v769, %v767
    %v820 = vpack.c.b16 %v772, %v770
    %v821 = vpack.c.b16 %v773, %v771
    %v822 = vpack.c.b16 %v776, %v774
    %v823 = vpack.c.b16 %v777, %v775
    %v824 = vpack.c.b16 %v780, %v778
    %v825 = vpack.c.b16 %v781, %v779
    %v826 = vpack.c.b16 %v784, %v782
    %v827 = vpack.c.b16 %v785, %v783
    %v828 = vpack.c.b16 %v788, %v786
    %v829 = vpack.c.b16 %v789, %v787
    %v830 = vpack.c.b16 %v792, %v790
    %v831 = vpack.c.b16 %v793, %v791
    %v832 = vpack.c.b16 %v796, %v794
    %v833 = vpack.c.b16 %v797, %v795
    %v834 = vpack.c.b16 %v800, %v798
    %v835 = vpack.c.b16 %v801, %v799
    %v836 = vpack.c.b16 %v804, %v802
    %v837 = vpack.c.b16 %v805, %v803
    %870 = vmatprep.subr.bf16.mxu0 %v807
    %871 = vmatpush1.bf16.msra.mxu0 %v806
    %872 = vmatprep.subr.bf16.mxu0 %v809
    %873 = vmatpush1.bf16.msra.mxu0 %v808
    %874 = vmatprep.subr.bf16.mxu0 %v811
    %875 = vmatpush1.bf16.msra.mxu0 %v810
    %876 = vmatprep.subr.bf16.mxu0 %v813
    %877 = vmatpush1.bf16.msra.mxu0 %v812
    %878 = vmatprep.subr.bf16.mxu0 %v815
    %879 = vmatpush1.bf16.msra.mxu0 %v814
    %880 = vmatprep.subr.bf16.mxu0 %v817
    %881 = vmatpush1.bf16.msra.mxu0 %v816
    %882 = vmatprep.subr.bf16.mxu0 %v819
    %883 = vmatpush1.bf16.msra.mxu0 %v818
    %884 = vmatprep.subr.bf16.mxu0 %v821
    %885 = vmatpush1.bf16.msra.mxu0 %v820
    %886 = vmatprep.subr.bf16.mxu0 %v823
    %887 = vmatpush1.bf16.msra.mxu0 %v822
    %888 = vmatprep.subr.bf16.mxu0 %v825
    %889 = vmatpush1.bf16.msra.mxu0 %v824
    %890 = vmatprep.subr.bf16.mxu0 %v827
    %891 = vmatpush1.bf16.msra.mxu0 %v826
    %892 = vmatprep.subr.bf16.mxu0 %v829
    %893 = vmatpush1.bf16.msra.mxu0 %v828
    %894 = vmatprep.subr.bf16.mxu0 %v831
    %895 = vmatpush1.bf16.msra.mxu0 %v830
    %896 = vmatprep.subr.bf16.mxu0 %v833
    %897 = vmatpush1.bf16.msra.mxu0 %v832
    %898 = vmatprep.subr.bf16.mxu0 %v835
    %899 = vmatpush1.bf16.msra.mxu0 %v834
    %900 = vmatprep.subr.bf16.mxu0 %v837
    %901 = vmatpush1.bf16.msra.mxu0 %v836
    %902 = vmatprep.mubr.bf16.mxu0 %v664
    %903 = vmatmul.mubr.bf16.gmra.mrb[0].mxu0 %v663
    %v904 = vpop.f32.mrb[0].mxu0
    %v905 = vadd.f32 %v703, %v904
    %v906 = vpop.f32.mrb[0].mxu0
    %v907 = vadd.f32 %v707, %v906
    %v908 = vpop.f32.mrb[0].mxu0
    %v909 = vpop.f32.mrb[0].mxu0
    %910 = vdwg.mxu0
    %v911 = vmax.f32 %v905, 0.0
    %v912 = vmax.f32 %v907, 0.0
    %s913 = scalar_lea.vmem [#allocation10], 19
    %v914 = vld [vmem:[%s913] ss:$8 sm:$0x3]
    %v915 = vld [vmem:[#allocation10 + $0x14] ss:$0 sm:$0xff]
    %v917 = vlaneseq
    %v918 = vshrl.u32 %v917, 7
    %v919 = vsub.s32 0, %v918
    %v920 = vrot.slane %v914, %v919
    %v921 = vlaneseq
    %v922 = vshrl.u32 %v921, 7
    %v923 = vsub.s32 1, %v922
    %v924 = vrot.slane %v914, %v923
    %v927 = vmul.f32 %v911, %v920
    %v928 = vmul.f32 %v912, %v924
    %v929 = vadd.f32 %v927, %v928
    %930 = vadd.xlane.f32.xlu0 %v929
    %v931 = vpop.xlane.xlu0 %930
    %v932 = vadd.f32 %v931, %v915
    %934 = vset.pattern.permute.xlu0 0
    %935 = vperm.xlu0 %934, %v932
    %v936 = vpop.permute.xlu0 %935
    %938 = vst [vmem:[%s8] sm:$0xff] %v936
    // Predicated region
    $region54: #{critic_forward.1} parent=1 // pred_check
      _
    $region55: #{critic_forward.1} parent=1 // pred_check_branch
      %940 = sbr.rel (0) target = $region57
    $region56: #{critic_forward.1} parent=1 // pred_region
      _
    $region57: #{critic_forward.1} parent=1 // pred_fallthru
      _
    // Predicated region
    $region58: #{critic_forward.1} parent=1 // pred_check
      _
    $region59: #{critic_forward.1} parent=1 // pred_check_branch
      %942 = sbr.rel (0) target = $region61
    $region60: #{critic_forward.1} parent=1 // pred_region
      _
    $region61: #{critic_forward.1} parent=1 // pred_fallthru
      _
    %943 = vsyncpa [#allocation4], 1
    %944 = vsyncpa [#allocation6], 1
    %945 = vsyncpa [#allocation9], 1

</llo_original>
